<compile_context>
chip_gen: v7x
topology: tpu7x:2x2x1
jax: 0.10.0
libtpu: 0.0.40
codegen_flags: <defaults>
</compile_context>

<pallas_src>
import jax
import jax.numpy as jnp
from jax.experimental import pallas as pl
from jax.experimental.pallas import tpu as pltpu


# ----------------------------------------------------------------------------
# Pallas kernel: per-modality projector + EDDI fusion (all three tasks share it)
# ----------------------------------------------------------------------------
def _eddi_fusion_kernel(beta_ref, xd_ref, xl_ref, xt_ref,
                        wd_ref, wl_ref, wt_ref,
                        bd_ref, bl_ref, bt_ref, out_ref):
    tb = xd_ref.shape[0]
    out_w = out_ref.shape[1]          # packed output width (8)
    beta = beta_ref[0, 0]

    def proj_sum(x_ref, w_ref, b_ref):
        # (TB, H) x (H, 256) on the MXU: bf16 operands, f32 accumulation.
        p = jnp.dot(x_ref[...], w_ref[...], preferred_element_type=jnp.float32)
        p = jnp.maximum(p + b_ref[...], 0.0)            # bias + ReLU in f32
        return jnp.sum(p, axis=1, keepdims=True)        # (TB, 1) EDDI sum

    ed = proj_sum(xd_ref, wd_ref, bd_ref)
    el = proj_sum(xl_ref, wl_ref, bl_ref)
    et = proj_sum(xt_ref, wt_ref, bt_ref)

    emax = jnp.maximum(jnp.maximum(ed, el), et)         # (TB, 1)
    logit = (ed * (0.33 + beta * (emax - ed)) +
             el * (0.33 + beta * (emax - el)) +
             et * (0.33 + beta * (emax - et)))          # (TB, 1)

    # Pack [logit, ed, el, et, emax, 0, 0, 0] into the 8-lane output using
    # lane-iota masks + selects (VPU only; no cross-lane concatenation).
    lane = jax.lax.broadcasted_iota(jnp.int32, (tb, out_w), 1)
    packed = jnp.where(lane == 0, logit, 0.0)
    packed = jnp.where(lane == 1, ed, packed)
    packed = jnp.where(lane == 2, el, packed)
    packed = jnp.where(lane == 3, et, packed)
    packed = jnp.where(lane == 4, emax, packed)
    out_ref[...] = packed


# ----------------------------------------------------------------------------
# Wrapper
# ----------------------------------------------------------------------------
def _round_up(x, m):
    return ((x + m - 1) // m) * m


def pack_fusion_params(params):
    """One-time host-side cast: bf16 projector weights, f32 biases."""
    return {
        "wd": params["wd"].astype(jnp.bfloat16),
        "wl": params["wl"].astype(jnp.bfloat16),
        "wt": params["wt"].astype(jnp.bfloat16),
        "bd": params["bd"].astype(jnp.float32),
        "bl": params["bl"].astype(jnp.float32),
        "bt": params["bt"].astype(jnp.float32),
    }


def eddi_fusion(demo_emb, lab_emb, text_emb, fused, beta=1.0):
    """Fusion head: returns (mortality, los, mechvent, (ed, el, et, emax))."""
    B = demo_emb.shape[0]
    # bf16 casts fuse into the producers; no wrapper-side concat.
    xd = demo_emb.astype(jnp.bfloat16)
    xl = lab_emb.astype(jnp.bfloat16)
    xt = text_emb.astype(jnp.bfloat16)
    Hd, Hl, Ht = xd.shape[1], xl.shape[1], xt.shape[1]
    P = fused["wd"].shape[1]
    OUT_W = 8                                    # packed payload width (32 B/row)

    # Batch tile: as large as fits comfortably, but >= 2 grid steps for any
    # non-tiny batch so the parallel grid axis can shard across v7x's 2 TCs.
    MAX_TB = 2048
    if B <= 32:
        TB = B
    else:
        TB = min(MAX_TB, _round_up(pl.cdiv(B, 2), 8))
    grid = (pl.cdiv(B, TB),)

    beta_arr = jnp.full((1, 1), beta, dtype=jnp.float32)

    out = pl.pallas_call(
        _eddi_fusion_kernel,
        out_shape=jax.ShapeDtypeStruct((B, OUT_W), jnp.float32),
        grid=grid,
        in_specs=[
            pl.BlockSpec(memory_space=pltpu.MemorySpace.SMEM),   # beta (scalar)
            pl.BlockSpec((TB, Hd), lambda i: (i, 0)),            # demo emb tile
            pl.BlockSpec((TB, Hl), lambda i: (i, 0)),            # lab emb tile
            pl.BlockSpec((TB, Ht), lambda i: (i, 0)),            # text emb tile
            pl.BlockSpec((Hd, P), lambda i: (0, 0)),             # demo W (resident)
            pl.BlockSpec((Hl, P), lambda i: (0, 0)),             # lab W (resident)
            pl.BlockSpec((Ht, P), lambda i: (0, 0)),             # text W (resident)
            pl.BlockSpec((1, P), lambda i: (0, 0)),              # demo bias
            pl.BlockSpec((1, P), lambda i: (0, 0)),              # lab bias
            pl.BlockSpec((1, P), lambda i: (0, 0)),              # text bias
        ],
        out_specs=pl.BlockSpec((TB, OUT_W), lambda i: (i, 0)),
        compiler_params=pltpu.CompilerParams(
            dimension_semantics=("parallel",)),
    )(beta_arr, xd, xl, xt,
      fused["wd"], fused["wl"], fused["wt"],
      fused["bd"], fused["bl"], fused["bt"])

    logit = out[:, 0:1]
    ed = out[:, 1:2]
    el = out[:, 2:3]
    et = out[:, 3:4]
    emax = out[:, 4:5]
    # The PyTorch forward recomputes the identical (deterministic) branch for
    # mortality / LOS / mech-vent; values are byte-identical, so replicate.
    return logit, logit, logit, (ed, el, et, emax)


# ----------------------------------------------------------------------------
# Pure-JAX reference (same math as the PyTorch forward, with the kernel's
# bf16-operand quantization applied; f32 accumulation in both).
# ----------------------------------------------------------------------------
def fusion_reference(demo_emb, lab_emb, text_emb, params, beta):
    bf = lambda a: a.astype(jnp.bfloat16).astype(jnp.float32)

    def proj_sum(x, w, b):
        return jnp.sum(jnp.maximum(bf(x) @ bf(w) + b, 0.0), axis=1, keepdims=True)

    ed = proj_sum(demo_emb, params["wd"], params["bd"])
    el = proj_sum(lab_emb, params["wl"], params["bl"])
    et = proj_sum(text_emb, params["wt"], params["bt"])
    emax = jnp.max(jnp.concatenate([ed, el, et], axis=1), axis=1, keepdims=True)
    logit = (ed * (0.33 + beta * (emax - ed)) +
             el * (0.33 + beta * (emax - el)) +
             et * (0.33 + beta * (emax - et)))
    return logit, ed, el, et, emax


# ----------------------------------------------------------------------------
# Deterministic parameter / backbone-stub setup (plain-JAX glue)
# ----------------------------------------------------------------------------
def init_params(key, demo_hidden, lab_hidden, text_dim, proj=256):
    ks = jax.random.split(key, 6)
    s = lambda fan_in: 1.0 / jnp.sqrt(fan_in)
    return {
        "wd": jax.random.uniform(ks[0], (demo_hidden, proj), jnp.float32,
                                 -s(demo_hidden), s(demo_hidden)),
        "bd": jax.random.uniform(ks[1], (1, proj), jnp.float32,
                                 -s(demo_hidden), s(demo_hidden)),
        "wl": jax.random.uniform(ks[2], (lab_hidden, proj), jnp.float32,
                                 -s(lab_hidden), s(lab_hidden)),
        "bl": jax.random.uniform(ks[3], (1, proj), jnp.float32,
                                 -s(lab_hidden), s(lab_hidden)),
        "wt": jax.random.uniform(ks[4], (text_dim, proj), jnp.float32,
                                 -s(text_dim), s(text_dim)),
        "bt": jax.random.uniform(ks[5], (1, proj), jnp.float32,
                                 -s(text_dim), s(text_dim)),
    }


def behrt_demo_stub(params, dummy_ids, attn_mask, age, gender, eth, ins):
    """Stand-in for the external BEHRT demographic encoder (glue, not this
    module's own compute): embed categorical ids, masked mean-pool -> (B, H)."""
    emb = (params["tok"][dummy_ids] + params["age"][age] +
           params["gender"][gender] + params["eth"][eth] + params["ins"][ins])
    mask = attn_mask[..., None].astype(jnp.float32)
    return (emb * mask).sum(axis=1) / jnp.maximum(mask.sum(axis=1), 1.0)


def behrt_lab_stub(params, lab_features):
    """Stand-in for the external lab-feature encoder -> (B, lab_hidden)."""
    return jnp.tanh(lab_features @ params["w"] + params["b"])


# ----------------------------------------------------------------------------
if __name__ == "__main__":
    key = jax.random.PRNGKey(0)
    k_proj, k_demo, k_lab, k_data = jax.random.split(key, 4)

    # Small shapes consistent with the forward pass
    B = 8               # batch
    SEQ = 8             # demo token sequence length
    DEMO_H = 32         # behrt_demo.bert.config.hidden_size
    LAB_IN = 16         # raw lab feature dim
    LAB_H = 32          # behrt_lab.hidden_size
    TEXT_D = 32         # text_embed_size
    VOCAB = 16
    BETA = 1.0

    params = init_params(k_proj, DEMO_H, LAB_H, TEXT_D)
    fused = pack_fusion_params(params)

    # Backbone-stub parameters (deterministic)
    kd = jax.random.split(k_demo, 5)
    demo_params = {
        "tok":    0.02 * jax.random.normal(kd[0], (VOCAB, DEMO_H)),
        "age":    0.02 * jax.random.normal(kd[1], (VOCAB, DEMO_H)),
        "gender": 0.02 * jax.random.normal(kd[2], (4, DEMO_H)),
        "eth":    0.02 * jax.random.normal(kd[3], (8, DEMO_H)),
        "ins":    0.02 * jax.random.normal(kd[4], (8, DEMO_H)),
    }
    kl = jax.random.split(k_lab, 2)
    lab_params = {
        "w": 0.1 * jax.random.normal(kl[0], (LAB_IN, LAB_H)),
        "b": jnp.zeros((LAB_H,), jnp.float32),
    }

    # Example inputs
    ki = jax.random.split(k_data, 10)
    demo_dummy_ids = jax.random.randint(ki[0], (B, SEQ), 0, VOCAB)
    demo_attn_mask = jnp.ones((B, SEQ), jnp.int32)
    age_ids = jax.random.randint(ki[1], (B, SEQ), 0, VOCAB)
    gender_ids = jax.random.randint(ki[2], (B, SEQ), 0, 4)
    ethnicity_ids = jax.random.randint(ki[3], (B, SEQ), 0, 8)
    insurance_ids = jax.random.randint(ki[4], (B, SEQ), 0, 8)
    lab_features = jax.random.normal(ki[5], (B, LAB_IN), jnp.float32)
    aggregated_text_embedding = jax.random.normal(ki[6], (B, TEXT_D), jnp.float32)

    # Backbones (plain-JAX glue)
    demo_embedding = behrt_demo_stub(demo_params, demo_dummy_ids, demo_attn_mask,
                                     age_ids, gender_ids, ethnicity_ids,
                                     insurance_ids)
    lab_embedding = behrt_lab_stub(lab_params, lab_features)

    # Hot path: Pallas kernel (small batch, single grid step)
    mort, los, mv, (ed, el, et, emax) = eddi_fusion(
        demo_embedding, lab_embedding, aggregated_text_embedding,
        fused, beta=BETA)
    jax.block_until_ready((mort, los, mv, ed, el, et, emax))

    r_logit, r_ed, r_el, r_et, r_max = fusion_reference(
        demo_embedding, lab_embedding, aggregated_text_embedding, params, BETA)

    assert jnp.allclose(mort, r_logit, rtol=1e-3, atol=1e-2)
    assert jnp.allclose(los, r_logit, rtol=1e-3, atol=1e-2)
    assert jnp.allclose(mv, r_logit, rtol=1e-3, atol=1e-2)
    assert jnp.allclose(ed, r_ed, rtol=1e-3, atol=1e-2)
    assert jnp.allclose(el, r_el, rtol=1e-3, atol=1e-2)
    assert jnp.allclose(et, r_et, rtol=1e-3, atol=1e-2)
    assert jnp.allclose(emax, r_max, rtol=1e-3, atol=1e-2)

    # Second check: larger batch exercising the multi-step grid and a partial
    # final block (B=300 -> TB=152, grid=(2,)).
    kb = jax.random.split(ki[7], 3)
    B2 = 300
    d2 = 0.05 * jax.random.normal(kb[0], (B2, DEMO_H), jnp.float32)
    l2 = jax.random.normal(kb[1], (B2, LAB_H), jnp.float32)
    t2 = jax.random.normal(kb[2], (B2, TEXT_D), jnp.float32)
    mort2, _, _, (ed2, el2, et2, emax2) = eddi_fusion(d2, l2, t2, fused, beta=BETA)
    jax.block_until_ready((mort2, ed2, el2, et2, emax2))
    g_logit, g_ed, g_el, g_et, g_max = fusion_reference(d2, l2, t2, params, BETA)
    assert jnp.allclose(mort2, g_logit, rtol=1e-3, atol=1e-2)
    assert jnp.allclose(ed2, g_ed, rtol=1e-3, atol=1e-2)
    assert jnp.allclose(el2, g_el, rtol=1e-3, atol=1e-2)
    assert jnp.allclose(et2, g_et, rtol=1e-3, atol=1e-2)
    assert jnp.allclose(emax2, g_max, rtol=1e-3, atol=1e-2)

    print("KERNEL_OK")
</pallas_src>

<mosaic_0001>
module attributes {stable_mosaic.version = 11 : i64} {
  func.func @_eddi_fusion_kernel(%arg0: i32, %arg1: memref<1x1xf32, #tpu.memory_space<smem>>, %arg2: memref<8x32xbf16, #tpu.memory_space<vmem>>, %arg3: memref<8x32xbf16, #tpu.memory_space<vmem>>, %arg4: memref<8x32xbf16, #tpu.memory_space<vmem>>, %arg5: memref<32x256xbf16, #tpu.memory_space<vmem>>, %arg6: memref<32x256xbf16, #tpu.memory_space<vmem>>, %arg7: memref<32x256xbf16, #tpu.memory_space<vmem>>, %arg8: memref<1x256xf32, #tpu.memory_space<vmem>>, %arg9: memref<1x256xf32, #tpu.memory_space<vmem>>, %arg10: memref<1x256xf32, #tpu.memory_space<vmem>>, %arg11: memref<8x8xf32, #tpu.memory_space<vmem>>) attributes {dimension_semantics = [#tpu.dimension_semantics<parallel>], iteration_bounds = array<i64: 1>, scalar_prefetch = 0 : i64, scratch_operands = 0 : i64, tpu.core_type = #tpu.core_type<tc>, window_params = [{transform_indices = @transform_0, window_bounds = array<i64: 1, 1>}, {transform_indices = @transform_1, window_bounds = array<i64: 8, 32>}, {transform_indices = @transform_2, window_bounds = array<i64: 8, 32>}, {transform_indices = @transform_3, window_bounds = array<i64: 8, 32>}, {pipeline_mode = #tpu.pipeline_mode<synchronous>, transform_indices = @transform_4, window_bounds = array<i64: 32, 256>}, {pipeline_mode = #tpu.pipeline_mode<synchronous>, transform_indices = @transform_5, window_bounds = array<i64: 32, 256>}, {pipeline_mode = #tpu.pipeline_mode<synchronous>, transform_indices = @transform_6, window_bounds = array<i64: 32, 256>}, {pipeline_mode = #tpu.pipeline_mode<synchronous>, transform_indices = @transform_7, window_bounds = array<i64: 1, 256>}, {pipeline_mode = #tpu.pipeline_mode<synchronous>, transform_indices = @transform_8, window_bounds = array<i64: 1, 256>}, {pipeline_mode = #tpu.pipeline_mode<synchronous>, transform_indices = @transform_9, window_bounds = array<i64: 1, 256>}, {transform_indices = @transform_10, window_bounds = array<i64: 8, 8>}]} {
    %c0 = arith.constant 0 : index
    %c0_0 = arith.constant 0 : index
    %0 = memref.load %arg1[%c0, %c0_0] : memref<1x1xf32, #tpu.memory_space<smem>>
    %c0_1 = arith.constant 0 : index
    %c0_2 = arith.constant 0 : index
    %1 = vector.load %arg2[%c0_1, %c0_2] : memref<8x32xbf16, #tpu.memory_space<vmem>>, vector<8x32xbf16>
    %c0_3 = arith.constant 0 : index
    %c0_4 = arith.constant 0 : index
    %2 = vector.load %arg5[%c0_3, %c0_4] : memref<32x256xbf16, #tpu.memory_space<vmem>>, vector<32x256xbf16>
    %cst = arith.constant dense<0.000000e+00> : vector<8x256xf32>
    %3 = tpu.matmul %1, %2, %cst {dimension_numbers = #tpu.dot_dimension_numbers<[1], [0], [0], [1], [0, 0, 1, 1], [], []>} : vector<8x32xbf16>, vector<32x256xbf16>, vector<8x256xf32> -> vector<8x256xf32>
    %c0_5 = arith.constant 0 : index
    %c0_6 = arith.constant 0 : index
    %4 = vector.load %arg8[%c0_5, %c0_6] : memref<1x256xf32, #tpu.memory_space<vmem>>, vector<1x256xf32>
    %5 = vector.broadcast %4 : vector<1x256xf32> to vector<8x256xf32>
    %6 = arith.addf %3, %5 : vector<8x256xf32>
    %cst_7 = arith.constant 0.000000e+00 : f32
    %7 = vector.broadcast %cst_7 : f32 to vector<8x256xf32>
    %8 = arith.maximumf %6, %7 : vector<8x256xf32>
    %cst_8 = arith.constant dense<0.000000e+00> : vector<8xf32>
    %9 = vector.multi_reduction <add>, %8, %cst_8 [1] : vector<8x256xf32> to vector<8xf32>
    %10 = vector.shape_cast %9 : vector<8xf32> to vector<8x1xf32>
    %c0_9 = arith.constant 0 : index
    %c0_10 = arith.constant 0 : index
    %11 = vector.load %arg3[%c0_9, %c0_10] : memref<8x32xbf16, #tpu.memory_space<vmem>>, vector<8x32xbf16>
    %c0_11 = arith.constant 0 : index
    %c0_12 = arith.constant 0 : index
    %12 = vector.load %arg6[%c0_11, %c0_12] : memref<32x256xbf16, #tpu.memory_space<vmem>>, vector<32x256xbf16>
    %cst_13 = arith.constant dense<0.000000e+00> : vector<8x256xf32>
    %13 = tpu.matmul %11, %12, %cst_13 {dimension_numbers = #tpu.dot_dimension_numbers<[1], [0], [0], [1], [0, 0, 1, 1], [], []>} : vector<8x32xbf16>, vector<32x256xbf16>, vector<8x256xf32> -> vector<8x256xf32>
    %c0_14 = arith.constant 0 : index
    %c0_15 = arith.constant 0 : index
    %14 = vector.load %arg9[%c0_14, %c0_15] : memref<1x256xf32, #tpu.memory_space<vmem>>, vector<1x256xf32>
    %15 = vector.broadcast %14 : vector<1x256xf32> to vector<8x256xf32>
    %16 = arith.addf %13, %15 : vector<8x256xf32>
    %cst_16 = arith.constant 0.000000e+00 : f32
    %17 = vector.broadcast %cst_16 : f32 to vector<8x256xf32>
    %18 = arith.maximumf %16, %17 : vector<8x256xf32>
    %cst_17 = arith.constant dense<0.000000e+00> : vector<8xf32>
    %19 = vector.multi_reduction <add>, %18, %cst_17 [1] : vector<8x256xf32> to vector<8xf32>
    %20 = vector.shape_cast %19 : vector<8xf32> to vector<8x1xf32>
    %c0_18 = arith.constant 0 : index
    %c0_19 = arith.constant 0 : index
    %21 = vector.load %arg4[%c0_18, %c0_19] : memref<8x32xbf16, #tpu.memory_space<vmem>>, vector<8x32xbf16>
    %c0_20 = arith.constant 0 : index
    %c0_21 = arith.constant 0 : index
    %22 = vector.load %arg7[%c0_20, %c0_21] : memref<32x256xbf16, #tpu.memory_space<vmem>>, vector<32x256xbf16>
    %cst_22 = arith.constant dense<0.000000e+00> : vector<8x256xf32>
    %23 = tpu.matmul %21, %22, %cst_22 {dimension_numbers = #tpu.dot_dimension_numbers<[1], [0], [0], [1], [0, 0, 1, 1], [], []>} : vector<8x32xbf16>, vector<32x256xbf16>, vector<8x256xf32> -> vector<8x256xf32>
    %c0_23 = arith.constant 0 : index
    %c0_24 = arith.constant 0 : index
    %24 = vector.load %arg10[%c0_23, %c0_24] : memref<1x256xf32, #tpu.memory_space<vmem>>, vector<1x256xf32>
    %25 = vector.broadcast %24 : vector<1x256xf32> to vector<8x256xf32>
    %26 = arith.addf %23, %25 : vector<8x256xf32>
    %cst_25 = arith.constant 0.000000e+00 : f32
    %27 = vector.broadcast %cst_25 : f32 to vector<8x256xf32>
    %28 = arith.maximumf %26, %27 : vector<8x256xf32>
    %cst_26 = arith.constant dense<0.000000e+00> : vector<8xf32>
    %29 = vector.multi_reduction <add>, %28, %cst_26 [1] : vector<8x256xf32> to vector<8xf32>
    %30 = vector.shape_cast %29 : vector<8xf32> to vector<8x1xf32>
    %31 = arith.maximumf %10, %20 : vector<8x1xf32>
    %32 = arith.maximumf %31, %30 : vector<8x1xf32>
    %33 = arith.subf %32, %10 : vector<8x1xf32>
    %34 = vector.broadcast %0 : f32 to vector<8x1xf32>
    %35 = arith.mulf %34, %33 : vector<8x1xf32>
    %cst_27 = arith.constant 3.300000e-01 : f32
    %36 = vector.broadcast %cst_27 : f32 to vector<8x1xf32>
    %37 = arith.addf %36, %35 : vector<8x1xf32>
    %38 = arith.mulf %10, %37 : vector<8x1xf32>
    %39 = arith.subf %32, %20 : vector<8x1xf32>
    %40 = vector.broadcast %0 : f32 to vector<8x1xf32>
    %41 = arith.mulf %40, %39 : vector<8x1xf32>
    %cst_28 = arith.constant 3.300000e-01 : f32
    %42 = vector.broadcast %cst_28 : f32 to vector<8x1xf32>
    %43 = arith.addf %42, %41 : vector<8x1xf32>
    %44 = arith.mulf %20, %43 : vector<8x1xf32>
    %45 = arith.addf %38, %44 : vector<8x1xf32>
    %46 = arith.subf %32, %30 : vector<8x1xf32>
    %47 = vector.broadcast %0 : f32 to vector<8x1xf32>
    %48 = arith.mulf %47, %46 : vector<8x1xf32>
    %cst_29 = arith.constant 3.300000e-01 : f32
    %49 = vector.broadcast %cst_29 : f32 to vector<8x1xf32>
    %50 = arith.addf %49, %48 : vector<8x1xf32>
    %51 = arith.mulf %30, %50 : vector<8x1xf32>
    %52 = arith.addf %45, %51 : vector<8x1xf32>
    %53 = tpu.iota {dimensions = array<i32: 1>} : vector<8x8xi32>
    %c0_i32 = arith.constant 0 : i32
    %54 = vector.broadcast %c0_i32 : i32 to vector<8x8xi32>
    %55 = arith.cmpi eq, %53, %54 : vector<8x8xi32>
    %cst_30 = arith.constant 0.000000e+00 : f32
    %56 = vector.shape_cast %52 : vector<8x1xf32> to vector<8x1xf32>
    %57 = vector.broadcast %56 : vector<8x1xf32> to vector<8x8xf32>
    %58 = vector.broadcast %cst_30 : f32 to vector<8x8xf32>
    %59 = arith.select %55, %57, %58 : vector<8x8xi1>, vector<8x8xf32>
    %c1_i32 = arith.constant 1 : i32
    %60 = vector.broadcast %c1_i32 : i32 to vector<8x8xi32>
    %61 = arith.cmpi eq, %53, %60 : vector<8x8xi32>
    %62 = vector.shape_cast %10 : vector<8x1xf32> to vector<8x1xf32>
    %63 = vector.broadcast %62 : vector<8x1xf32> to vector<8x8xf32>
    %64 = arith.select %61, %63, %59 : vector<8x8xi1>, vector<8x8xf32>
    %c2_i32 = arith.constant 2 : i32
    %65 = vector.broadcast %c2_i32 : i32 to vector<8x8xi32>
    %66 = arith.cmpi eq, %53, %65 : vector<8x8xi32>
    %67 = vector.shape_cast %20 : vector<8x1xf32> to vector<8x1xf32>
    %68 = vector.broadcast %67 : vector<8x1xf32> to vector<8x8xf32>
    %69 = arith.select %66, %68, %64 : vector<8x8xi1>, vector<8x8xf32>
    %c3_i32 = arith.constant 3 : i32
    %70 = vector.broadcast %c3_i32 : i32 to vector<8x8xi32>
    %71 = arith.cmpi eq, %53, %70 : vector<8x8xi32>
    %72 = vector.shape_cast %30 : vector<8x1xf32> to vector<8x1xf32>
    %73 = vector.broadcast %72 : vector<8x1xf32> to vector<8x8xf32>
    %74 = arith.select %71, %73, %69 : vector<8x8xi1>, vector<8x8xf32>
    %c4_i32 = arith.constant 4 : i32
    %75 = vector.broadcast %c4_i32 : i32 to vector<8x8xi32>
    %76 = arith.cmpi eq, %53, %75 : vector<8x8xi32>
    %77 = vector.shape_cast %32 : vector<8x1xf32> to vector<8x1xf32>
    %78 = vector.broadcast %77 : vector<8x1xf32> to vector<8x8xf32>
    %79 = arith.select %76, %78, %74 : vector<8x8xi1>, vector<8x8xf32>
    %c0_31 = arith.constant 0 : index
    %c0_32 = arith.constant 0 : index
    %80 = vector.load %arg11[%c0_31, %c0_32] : memref<8x8xf32, #tpu.memory_space<vmem>>, vector<8x8xf32>
    tpu.vector_store %arg11[%c0_31, %c0_32], %79 {strides = array<i32>} : memref<8x8xf32, #tpu.memory_space<vmem>>, vector<8x8xf32>,
    return
  }
  func.func @transform_0(%arg0: i32) -> (i32, i32) {
    %c0_i32 = arith.constant 0 : i32
    %c0_i32_0 = arith.constant 0 : i32
    %c0_i32_1 = arith.constant 0 : i32
    return %c0_i32, %c0_i32_0 : i32, i32
  }
  func.func @transform_1(%arg0: i32) -> (i32, i32) {
    %c0_i32 = arith.constant 0 : i32
    %c0_i32_0 = arith.constant 0 : i32
    return %arg0, %c0_i32 : i32, i32
  }
  func.func @transform_2(%arg0: i32) -> (i32, i32) {
    %c0_i32 = arith.constant 0 : i32
    %c0_i32_0 = arith.constant 0 : i32
    return %arg0, %c0_i32 : i32, i32
  }
  func.func @transform_3(%arg0: i32) -> (i32, i32) {
    %c0_i32 = arith.constant 0 : i32
    %c0_i32_0 = arith.constant 0 : i32
    return %arg0, %c0_i32 : i32, i32
  }
  func.func @transform_4(%arg0: i32) -> (i32, i32) {
    %c0_i32 = arith.constant 0 : i32
    %c0_i32_0 = arith.constant 0 : i32
    %c0_i32_1 = arith.constant 0 : i32
    return %c0_i32, %c0_i32_0 : i32, i32
  }
  func.func @transform_5(%arg0: i32) -> (i32, i32) {
    %c0_i32 = arith.constant 0 : i32
    %c0_i32_0 = arith.constant 0 : i32
    %c0_i32_1 = arith.constant 0 : i32
    return %c0_i32, %c0_i32_0 : i32, i32
  }
  func.func @transform_6(%arg0: i32) -> (i32, i32) {
    %c0_i32 = arith.constant 0 : i32
    %c0_i32_0 = arith.constant 0 : i32
    %c0_i32_1 = arith.constant 0 : i32
    return %c0_i32, %c0_i32_0 : i32, i32
  }
  func.func @transform_7(%arg0: i32) -> (i32, i32) {
    %c0_i32 = arith.constant 0 : i32
    %c0_i32_0 = arith.constant 0 : i32
    %c0_i32_1 = arith.constant 0 : i32
    return %c0_i32, %c0_i32_0 : i32, i32
  }
  func.func @transform_8(%arg0: i32) -> (i32, i32) {
    %c0_i32 = arith.constant 0 : i32
    %c0_i32_0 = arith.constant 0 : i32
    %c0_i32_1 = arith.constant 0 : i32
    return %c0_i32, %c0_i32_0 : i32, i32
  }
  func.func @transform_9(%arg0: i32) -> (i32, i32) {
    %c0_i32 = arith.constant 0 : i32
    %c0_i32_0 = arith.constant 0 : i32
    %c0_i32_1 = arith.constant 0 : i32
    return %c0_i32, %c0_i32_0 : i32, i32
  }
  func.func @transform_10(%arg0: i32) -> (i32, i32) {
    %c0_i32 = arith.constant 0 : i32
    %c0_i32_0 = arith.constant 0 : i32
    return %arg0, %c0_i32 : i32, i32
  }
}

</mosaic_0001>

<llo_original>
// kernel: tpu_custom_call.1
$region0: #{tpu_custom_call.1}
  #allocation0 [shape = 'u32[]', space=smem, size = 0x4, offset = 0x4, fixed_abs, tag = 'smem constant byte address 0x4 - core index']
  #allocation1 [shape = 'u32[144,128]{1,0:T(1,128)}', space=vmem, size = 0x12000, scoped, tag = 'internal scratch']
  #allocation2 [shape = 'f32[1,1]{1,0:T(1,128)S(6)}', space=smem, size = 0x200, scoped, tag = 'scoped memory for tpu_custom_call.1']
  %s0 = inlined_call_operand.<no memory space> [shape: f32[1,1], index: 0, kind: input, shape index: {}]
  %s1 = inlined_call_operand.hbm [shape: bf16[8,32], index: 1, kind: input, shape index: {}]
  %s2 = inlined_call_operand.vmem [shape: bf16[8,32], index: 2, kind: input, shape index: {}]
  %s3 = inlined_call_operand.vmem [shape: bf16[8,32], index: 3, kind: input, shape index: {}]
  %s4 = inlined_call_operand.hbm [shape: bf16[32,256], index: 4, kind: input, shape index: {}]
  %s5 = inlined_call_operand.hbm [shape: bf16[32,256], index: 5, kind: input, shape index: {}]
  %s6 = inlined_call_operand.hbm [shape: bf16[32,256], index: 6, kind: input, shape index: {}]
  %s7 = inlined_call_operand.vmem [shape: f32[1,256], index: 7, kind: input, shape index: {}]
  %s8 = inlined_call_operand.vmem [shape: f32[1,256], index: 8, kind: input, shape index: {}]
  %s9 = inlined_call_operand.vmem [shape: f32[1,256], index: 9, kind: input, shape index: {}]
  %s10 = inlined_call_operand.hbm [shape: f32[8,8], index: 10, kind: output, shape index: {}]
  %s11 = sld [smem:[#allocation0]]
  $region66: #{tpu_custom_call.1} parent=0
    _
  %s13 = ssub.s32 1, %s11
  %s14 = scalar_select 0, %s13, %s11
  %15 = sst [smem:[#allocation2]] %s0
  $region1: #{tpu_custom_call.1} parent=0
    #allocation3 [shape = 'u8[2048]{0}', space=vmem, size = 0x800, scoped, tag = 'input window, operand 1, single buffered']
    #allocation4 [shape = 's32[1]{0}', space=sflag, size = 0x4, scoped, tag = 'scoped memory for tpu_custom_call.1']
    #allocation5 [shape = 's32[1]{0}', space=sflag, size = 0x4, scoped, tag = 'scoped memory for tpu_custom_call.1']
    #allocation6 [shape = 'u8[16384]{0}', space=vmem, size = 0x4000, scoped, tag = 'input window, operand 4, single buffered']
    #allocation7 [shape = 's32[1]{0}', space=sflag, size = 0x4, scoped, tag = 'scoped memory for tpu_custom_call.1']
    #allocation8 [shape = 'u8[16384]{0}', space=vmem, size = 0x4000, scoped, tag = 'input window, operand 5, single buffered']
    #allocation9 [shape = 'u8[16384]{0}', space=vmem, size = 0x4000, scoped, tag = 'input window, operand 6, single buffered']
    #allocation10 [shape = 's32[1]{0}', space=sflag, size = 0x4, scoped, tag = 'scoped memory for tpu_custom_call.1']
    #allocation11 [shape = 'u8[4096]{0}', space=vmem, size = 0x1000, scoped, tag = 'output window, operand 0, single buffered']
    %16 = vsyncpa [#allocation4], 0
    %17 = vsyncpa [#allocation7], 0
    %18 = vsyncpa [#allocation10], 0
    %19 = vsyncpa [#allocation5], 0
    // Predicated region
    $region2: #{tpu_custom_call.1} parent=1 // pred_check
      _
    $region3: #{tpu_custom_call.1} parent=1 // pred_check_branch
      %21 = sbr.rel (0) target = $region5
    $region4: #{tpu_custom_call.1} parent=1 // pred_region
      _
    $region5: #{tpu_custom_call.1} parent=1 // pred_fallthru
      _
    // Predicated region
    $region6: #{tpu_custom_call.1} parent=1 // pred_check
      _
    $region7: #{tpu_custom_call.1} parent=1 // pred_check_branch
      %23 = sbr.rel (0) target = $region9
    $region8: #{tpu_custom_call.1} parent=1 // pred_region
      %s25 = ssub.s32 64, 64
      %26 = vsyncadd [#allocation4], %s25
      %s28 = sshll.u32 [#allocation3], 4
      %s29 = int_to_ptr.vmem [resolvable:$true] %s28
      %31 = dma.hbm_to_vmem [thread:$0]  %s1, 64, %s29, [#allocation4]
    $region9: #{tpu_custom_call.1} parent=1 // pred_fallthru
      _
    // Predicated region
    $region10: #{tpu_custom_call.1} parent=1 // pred_check
      _
    $region11: #{tpu_custom_call.1} parent=1 // pred_check_branch
      %33 = sbr.rel (0) target = $region13
    $region12: #{tpu_custom_call.1} parent=1 // pred_region
      _
    $region13: #{tpu_custom_call.1} parent=1 // pred_fallthru
      _
    // Predicated region
    $region14: #{tpu_custom_call.1} parent=1 // pred_check
      _
    $region15: #{tpu_custom_call.1} parent=1 // pred_check_branch
      %35 = sbr.rel (0) target = $region17
    $region16: #{tpu_custom_call.1} parent=1 // pred_region
      _
    $region17: #{tpu_custom_call.1} parent=1 // pred_fallthru
      _
    // Predicated region
    $region18: #{tpu_custom_call.1} parent=1 // pred_check
      _
    $region19: #{tpu_custom_call.1} parent=1 // pred_check_branch
      %37 = sbr.rel (0) target = $region21
    $region20: #{tpu_custom_call.1} parent=1 // pred_region
      %s39 = ssub.s32 512, 512
      %40 = vsyncadd [#allocation7], %s39
      %s41 = sshll.u32 [#allocation6], 4
      %s42 = int_to_ptr.vmem [resolvable:$true] %s41
      %47 = dma.hbm_to_vmem [thread:$0]  %s4, 512, %s42, [#allocation7], 128, 128, 8
    $region21: #{tpu_custom_call.1} parent=1 // pred_fallthru
      _
    // Predicated region
    $region22: #{tpu_custom_call.1} parent=1 // pred_check
      _
    $region23: #{tpu_custom_call.1} parent=1 // pred_check_branch
      %49 = sbr.rel (0) target = $region25
    $region24: #{tpu_custom_call.1} parent=1 // pred_region
      %s51 = ssub.s32 512, 512
      %52 = vsyncadd [#allocation7], %s51
      %s53 = sshll.u32 [#allocation8], 4
      %s54 = int_to_ptr.vmem [resolvable:$true] %s53
      %59 = dma.hbm_to_vmem [thread:$0]  %s5, 512, %s54, [#allocation7], 128, 128, 8
    $region25: #{tpu_custom_call.1} parent=1 // pred_fallthru
      _
    // Predicated region
    $region26: #{tpu_custom_call.1} parent=1 // pred_check
      _
    $region27: #{tpu_custom_call.1} parent=1 // pred_check_branch
      %61 = sbr.rel (0) target = $region29
    $region28: #{tpu_custom_call.1} parent=1 // pred_region
      %s63 = ssub.s32 512, 512
      %64 = vsyncadd [#allocation10], %s63
      %s65 = sshll.u32 [#allocation9], 4
      %s66 = int_to_ptr.vmem [resolvable:$true] %s65
      %71 = dma.hbm_to_vmem [thread:$0]  %s6, 512, %s66, [#allocation10], 128, 128, 8
    $region29: #{tpu_custom_call.1} parent=1 // pred_fallthru
      _
    // Predicated region
    $region30: #{tpu_custom_call.1} parent=1 // pred_check
      _
    $region31: #{tpu_custom_call.1} parent=1 // pred_check_branch
      %73 = sbr.rel (0) target = $region33
    $region32: #{tpu_custom_call.1} parent=1 // pred_region
      _
    $region33: #{tpu_custom_call.1} parent=1 // pred_fallthru
      _
    // Predicated region
    $region34: #{tpu_custom_call.1} parent=1 // pred_check
      _
    $region35: #{tpu_custom_call.1} parent=1 // pred_check_branch
      %75 = sbr.rel (0) target = $region37
    $region36: #{tpu_custom_call.1} parent=1 // pred_region
      _
    $region37: #{tpu_custom_call.1} parent=1 // pred_fallthru
      _
    // Predicated region
    $region38: #{tpu_custom_call.1} parent=1 // pred_check
      _
    $region39: #{tpu_custom_call.1} parent=1 // pred_check_branch
      %77 = sbr.rel (0) target = $region41
    $region40: #{tpu_custom_call.1} parent=1 // pred_region
      _
    $region41: #{tpu_custom_call.1} parent=1 // pred_fallthru
      _
    // Predicated region
    $region42: #{tpu_custom_call.1} parent=1 // pred_check
      _
    $region43: #{tpu_custom_call.1} parent=1 // pred_check_branch
      %79 = sbr.rel (0) target = $region45
    $region44: #{tpu_custom_call.1} parent=1 // pred_region
      %80 = dma.done [#allocation4], 64
    $region45: #{tpu_custom_call.1} parent=1 // pred_fallthru
      _
    // Predicated region
    $region46: #{tpu_custom_call.1} parent=1 // pred_check
      _
    $region47: #{tpu_custom_call.1} parent=1 // pred_check_branch
      %82 = sbr.rel (0) target = $region49
    $region48: #{tpu_custom_call.1} parent=1 // pred_region
      %83 = dma.done [#allocation7], 512
    $region49: #{tpu_custom_call.1} parent=1 // pred_fallthru
      _
    // Predicated region
    $region50: #{tpu_custom_call.1} parent=1 // pred_check
      _
    $region51: #{tpu_custom_call.1} parent=1 // pred_check_branch
      %85 = sbr.rel (0) target = $region53
    $region52: #{tpu_custom_call.1} parent=1 // pred_region
      %86 = dma.done [#allocation7], 512
    $region53: #{tpu_custom_call.1} parent=1 // pred_fallthru
      _
    // Predicated region
    $region54: #{tpu_custom_call.1} parent=1 // pred_check
      _
    $region55: #{tpu_custom_call.1} parent=1 // pred_check_branch
      %88 = sbr.rel (0) target = $region57
    $region56: #{tpu_custom_call.1} parent=1 // pred_region
      %89 = dma.done [#allocation10], 512
    $region57: #{tpu_custom_call.1} parent=1 // pred_fallthru
      _
    %s91 = sld [smem:[#allocation2]]
    %v92 = vld [vmem:[#allocation3] sm:$0xf]
    %v93 = vld [vmem:[#allocation6] sm:$0xff]
    %v94 = vld [vmem:[#allocation6 + $0x8] sm:$0xff]
    %v95 = vld [vmem:[#allocation6 + $0x10] sm:$0xff]
    %v96 = vld [vmem:[#allocation6 + $0x18] sm:$0xff]
    %v97 = vld [vmem:[%s7] sm:$0x3]
    %v99 = vlaneseq
    %v100 = vshrl.u32 %v99, 7
    %v101 = vsub.s32 0, %v100
    %v102 = vrot.slane %v97, %v101
    %v103 = vlaneseq
    %v104 = vshrl.u32 %v103, 7
    %v105 = vsub.s32 1, %v104
    %v106 = vrot.slane %v97, %v105
    %v113 = vunpack.c.l.b16 %v93
    %v114 = vunpack.c.h.b16 %v93
    %v115 = vunpack.c.l.b16 %v94
    %v116 = vunpack.c.h.b16 %v94
    %v117 = vunpack.c.l.b16 %v95
    %v118 = vunpack.c.h.b16 %v95
    %v119 = vunpack.c.l.b16 %v96
    %v120 = vunpack.c.h.b16 %v96
    %v121 = vpack.c.b16 %v115, %v113
    %v122 = vpack.c.b16 %v116, %v114
    %v123 = vpack.c.b16 %v119, %v117
    %v124 = vpack.c.b16 %v120, %v118
    %vm129 = vcmask 261120
    %v131 = vsel %vm129, %v92, 0
    %133 = vmatprep.subr.bf16.mxu0 %v122
    %134 = vmatpush1.bf16.msra.mxu0 %v121
    %135 = vmatprep.subr.bf16.mxu0 %v124
    %136 = vmatpush1.bf16.msra.mxu0 %v123
    %137 = vmatprep.subr.bf16.mxu0 0
    %138 = vmatpush1.bf16.msra.mxu0 0
    %139 = vmatprep.subr.bf16.mxu0 0
    %140 = vmatpush1.bf16.msra.mxu0 0
    %141 = vmatprep.subr.bf16.mxu0 0
    %142 = vmatpush1.bf16.msra.mxu0 0
    %143 = vmatprep.subr.bf16.mxu0 0
    %144 = vmatpush1.bf16.msra.mxu0 0
    %145 = vmatprep.subr.bf16.mxu0 0
    %146 = vmatpush1.bf16.msra.mxu0 0
    %147 = vmatprep.subr.bf16.mxu0 0
    %148 = vmatpush1.bf16.msra.mxu0 0
    %149 = vmatprep.subr.bf16.mxu0 0
    %150 = vmatpush1.bf16.msra.mxu0 0
    %151 = vmatprep.subr.bf16.mxu0 0
    %152 = vmatpush1.bf16.msra.mxu0 0
    %153 = vmatprep.subr.bf16.mxu0 0
    %154 = vmatpush1.bf16.msra.mxu0 0
    %155 = vmatprep.subr.bf16.mxu0 0
    %156 = vmatpush1.bf16.msra.mxu0 0
    %157 = vmatprep.subr.bf16.mxu0 0
    %158 = vmatpush1.bf16.msra.mxu0 0
    %159 = vmatprep.subr.bf16.mxu0 0
    %160 = vmatpush1.bf16.msra.mxu0 0
    %161 = vmatprep.subr.bf16.mxu0 0
    %162 = vmatpush1.bf16.msra.mxu0 0
    %163 = vmatprep.subr.bf16.mxu0 0
    %164 = vmatpush1.bf16.msra.mxu0 0
    %165 = vmatprep.mubr.bf16.mxu0 0
    %166 = vmatmul.mubr.bf16.gmra.mrb[0].mxu0 %v131
    %v167 = vpop.f32.mrb[0].mxu0
    %v168 = vadd.f32 %v102, %v167
    %v169 = vpop.f32.mrb[0].mxu0
    %v170 = vadd.f32 %v106, %v169
    %v171 = vpop.f32.mrb[0].mxu0
    %v172 = vpop.f32.mrb[0].mxu0
    %173 = vdwg.mxu0
    %v174 = vmax.f32 %v168, 0.0
    %v175 = vmax.f32 %v170, 0.0
    %v176 = vadd.f32 %v174, %v175
    %177 = vadd.xlane.f32.xlu0 %v176
    %v178 = vpop.xlane.xlu0 %177
    %v179 = vld [vmem:[%s2] sm:$0xf]
    %v180 = vld [vmem:[#allocation8] sm:$0xff]
    %v181 = vld [vmem:[#allocation8 + $0x8] sm:$0xff]
    %v182 = vld [vmem:[#allocation8 + $0x10] sm:$0xff]
    %v183 = vld [vmem:[#allocation8 + $0x18] sm:$0xff]
    %v184 = vld [vmem:[%s8] sm:$0x3]
    %v186 = vlaneseq
    %v187 = vshrl.u32 %v186, 7
    %v188 = vsub.s32 0, %v187
    %v189 = vrot.slane %v184, %v188
    %v190 = vlaneseq
    %v191 = vshrl.u32 %v190, 7
    %v192 = vsub.s32 1, %v191
    %v193 = vrot.slane %v184, %v192
    %v200 = vunpack.c.l.b16 %v180
    %v201 = vunpack.c.h.b16 %v180
    %v202 = vunpack.c.l.b16 %v181
    %v203 = vunpack.c.h.b16 %v181
    %v204 = vunpack.c.l.b16 %v182
    %v205 = vunpack.c.h.b16 %v182
    %v206 = vunpack.c.l.b16 %v183
    %v207 = vunpack.c.h.b16 %v183
    %v208 = vpack.c.b16 %v202, %v200
    %v209 = vpack.c.b16 %v203, %v201
    %v210 = vpack.c.b16 %v206, %v204
    %v211 = vpack.c.b16 %v207, %v205
    %v217 = vsel %vm129, %v179, 0
    %219 = vmatprep.subr.bf16.mxu0 %v209
    %220 = vmatpush1.bf16.msra.mxu0 %v208
    %221 = vmatprep.subr.bf16.mxu0 %v211
    %222 = vmatpush1.bf16.msra.mxu0 %v210
    %223 = vmatprep.subr.bf16.mxu0 0
    %224 = vmatpush1.bf16.msra.mxu0 0
    %225 = vmatprep.subr.bf16.mxu0 0
    %226 = vmatpush1.bf16.msra.mxu0 0
    %227 = vmatprep.subr.bf16.mxu0 0
    %228 = vmatpush1.bf16.msra.mxu0 0
    %229 = vmatprep.subr.bf16.mxu0 0
    %230 = vmatpush1.bf16.msra.mxu0 0
    %231 = vmatprep.subr.bf16.mxu0 0
    %232 = vmatpush1.bf16.msra.mxu0 0
    %233 = vmatprep.subr.bf16.mxu0 0
    %234 = vmatpush1.bf16.msra.mxu0 0
    %235 = vmatprep.subr.bf16.mxu0 0
    %236 = vmatpush1.bf16.msra.mxu0 0
    %237 = vmatprep.subr.bf16.mxu0 0
    %238 = vmatpush1.bf16.msra.mxu0 0
    %239 = vmatprep.subr.bf16.mxu0 0
    %240 = vmatpush1.bf16.msra.mxu0 0
    %241 = vmatprep.subr.bf16.mxu0 0
    %242 = vmatpush1.bf16.msra.mxu0 0
    %243 = vmatprep.subr.bf16.mxu0 0
    %244 = vmatpush1.bf16.msra.mxu0 0
    %245 = vmatprep.subr.bf16.mxu0 0
    %246 = vmatpush1.bf16.msra.mxu0 0
    %247 = vmatprep.subr.bf16.mxu0 0
    %248 = vmatpush1.bf16.msra.mxu0 0
    %249 = vmatprep.subr.bf16.mxu0 0
    %250 = vmatpush1.bf16.msra.mxu0 0
    %251 = vmatprep.mubr.bf16.mxu0 0
    %252 = vmatmul.mubr.bf16.gmra.mrb[0].mxu0 %v217
    %v253 = vpop.f32.mrb[0].mxu0
    %v254 = vadd.f32 %v189, %v253
    %v255 = vpop.f32.mrb[0].mxu0
    %v256 = vadd.f32 %v193, %v255
    %v257 = vpop.f32.mrb[0].mxu0
    %v258 = vpop.f32.mrb[0].mxu0
    %259 = vdwg.mxu0
    %v260 = vmax.f32 %v254, 0.0
    %v261 = vmax.f32 %v256, 0.0
    %v262 = vadd.f32 %v260, %v261
    %263 = vadd.xlane.f32.xlu0 %v262
    %v264 = vpop.xlane.xlu0 %263
    %v265 = vld [vmem:[%s3] sm:$0xf]
    %v266 = vld [vmem:[#allocation9] sm:$0xff]
    %v267 = vld [vmem:[#allocation9 + $0x8] sm:$0xff]
    %v268 = vld [vmem:[#allocation9 + $0x10] sm:$0xff]
    %v269 = vld [vmem:[#allocation9 + $0x18] sm:$0xff]
    %v270 = vld [vmem:[%s9] sm:$0x3]
    %v272 = vlaneseq
    %v273 = vshrl.u32 %v272, 7
    %v274 = vsub.s32 0, %v273
    %v275 = vrot.slane %v270, %v274
    %v276 = vlaneseq
    %v277 = vshrl.u32 %v276, 7
    %v278 = vsub.s32 1, %v277
    %v279 = vrot.slane %v270, %v278
    %v286 = vunpack.c.l.b16 %v266
    %v287 = vunpack.c.h.b16 %v266
    %v288 = vunpack.c.l.b16 %v267
    %v289 = vunpack.c.h.b16 %v267
    %v290 = vunpack.c.l.b16 %v268
    %v291 = vunpack.c.h.b16 %v268
    %v292 = vunpack.c.l.b16 %v269
    %v293 = vunpack.c.h.b16 %v269
    %v294 = vpack.c.b16 %v288, %v286
    %v295 = vpack.c.b16 %v289, %v287
    %v296 = vpack.c.b16 %v292, %v290
    %v297 = vpack.c.b16 %v293, %v291
    %v303 = vsel %vm129, %v265, 0
    %305 = vmatprep.subr.bf16.mxu0 %v295
    %306 = vmatpush1.bf16.msra.mxu0 %v294
    %307 = vmatprep.subr.bf16.mxu0 %v297
    %308 = vmatpush1.bf16.msra.mxu0 %v296
    %309 = vmatprep.subr.bf16.mxu0 0
    %310 = vmatpush1.bf16.msra.mxu0 0
    %311 = vmatprep.subr.bf16.mxu0 0
    %312 = vmatpush1.bf16.msra.mxu0 0
    %313 = vmatprep.subr.bf16.mxu0 0
    %314 = vmatpush1.bf16.msra.mxu0 0
    %315 = vmatprep.subr.bf16.mxu0 0
    %316 = vmatpush1.bf16.msra.mxu0 0
    %317 = vmatprep.subr.bf16.mxu0 0
    %318 = vmatpush1.bf16.msra.mxu0 0
    %319 = vmatprep.subr.bf16.mxu0 0
    %320 = vmatpush1.bf16.msra.mxu0 0
    %321 = vmatprep.subr.bf16.mxu0 0
    %322 = vmatpush1.bf16.msra.mxu0 0
    %323 = vmatprep.subr.bf16.mxu0 0
    %324 = vmatpush1.bf16.msra.mxu0 0
    %325 = vmatprep.subr.bf16.mxu0 0
    %326 = vmatpush1.bf16.msra.mxu0 0
    %327 = vmatprep.subr.bf16.mxu0 0
    %328 = vmatpush1.bf16.msra.mxu0 0
    %329 = vmatprep.subr.bf16.mxu0 0
    %330 = vmatpush1.bf16.msra.mxu0 0
    %331 = vmatprep.subr.bf16.mxu0 0
    %332 = vmatpush1.bf16.msra.mxu0 0
    %333 = vmatprep.subr.bf16.mxu0 0
    %334 = vmatpush1.bf16.msra.mxu0 0
    %335 = vmatprep.subr.bf16.mxu0 0
    %336 = vmatpush1.bf16.msra.mxu0 0
    %337 = vmatprep.mubr.bf16.mxu0 0
    %338 = vmatmul.mubr.bf16.gmra.mrb[0].mxu0 %v303
    %v339 = vpop.f32.mrb[0].mxu0
    %v340 = vadd.f32 %v275, %v339
    %v341 = vpop.f32.mrb[0].mxu0
    %v342 = vadd.f32 %v279, %v341
    %v343 = vpop.f32.mrb[0].mxu0
    %v344 = vpop.f32.mrb[0].mxu0
    %345 = vdwg.mxu0
    %v346 = vmax.f32 %v340, 0.0
    %v347 = vmax.f32 %v342, 0.0
    %v348 = vadd.f32 %v346, %v347
    %349 = vadd.xlane.f32.xlu0 %v348
    %v350 = vpop.xlane.xlu0 %349
    %v351 = vmax.f32 %v178, %v264
    %v352 = vmax.f32 %v351, %v350
    %v353 = vsub.f32 %v352, %v178
    %v354 = vstv %s91
    %v355 = vmul.f32 %v354, %v353
    %v356 = vadd.f32 %v355, 0.33
    %v357 = vmul.f32 %v178, %v356
    %v358 = vsub.f32 %v352, %v264
    %v359 = vmul.f32 %v354, %v358
    %v360 = vadd.f32 %v359, 0.33
    %v361 = vmul.f32 %v264, %v360
    %v362 = vadd.f32 %v357, %v361
    %v363 = vsub.f32 %v352, %v350
    %v364 = vmul.f32 %v354, %v363
    %v365 = vadd.f32 %v364, 0.33
    %v366 = vmul.f32 %v350, %v365
    %v367 = vadd.f32 %v362, %v366
    %v368 = vlaneseq
    %v369 = vand.u32 %v368, 127
    %vm370 = vcmp.eq.s32.totalorder %v369, 0
    %v371 = vsel %vm370, %v367, 0.0
    %vm372 = vcmp.eq.s32.totalorder %v369, 1
    %v373 = vsel %vm372, %v178, %v371
    %vm374 = vcmp.eq.s32.totalorder %v369, 2
    %v375 = vsel %vm374, %v264, %v373
    %vm376 = vcmp.eq.s32.totalorder %v369, 3
    %v377 = vsel %vm376, %v350, %v375
    %vm378 = vcmp.eq.s32.totalorder %v369, 4
    %v379 = vsel %vm378, %v352, %v377
    %vm380 = vcmask 64512
    %381 = vst.msk [vmem:[#allocation11] sm:$0xff] %vm380, %v379
    // Predicated region
    $region58: #{tpu_custom_call.1} parent=1 // pred_check
      _
    $region59: #{tpu_custom_call.1} parent=1 // pred_check_branch
      %383 = sbr.rel (0) target = $region61
    $region60: #{tpu_custom_call.1} parent=1 // pred_region
      %s385 = ssub.s32 128, 128
      %386 = vsyncadd [#allocation5], %s385
      %s388 = sshll.u32 [#allocation11], 4
      %s389 = int_to_ptr.vmem [resolvable:$true] %s388
      %391 = dma.vmem_to_hbm [thread:$0]  %s389, 128, %s10, [#allocation5]
    $region61: #{tpu_custom_call.1} parent=1 // pred_fallthru
      _
    // Predicated region
    $region62: #{tpu_custom_call.1} parent=1 // pred_check
      _
    $region63: #{tpu_custom_call.1} parent=1 // pred_check_branch
      %393 = sbr.rel (0) target = $region65
    $region64: #{tpu_custom_call.1} parent=1 // pred_region
      %394 = dma.done [#allocation5], 128
    $region65: #{tpu_custom_call.1} parent=1 // pred_fallthru
      _
    %395 = vsyncpa [#allocation4], 1
    %396 = vsyncpa [#allocation7], 1
    %397 = vsyncpa [#allocation10], 1
    %398 = vsyncpa [#allocation5], 1

</llo_original>
